<compile_context>
chip_gen: v6e
topology: v6e:2x2x1
jax: 0.10.0
libtpu: 0.0.40
codegen_flags: <defaults>
</compile_context>

<pallas_src>
import functools
import math

import jax
import jax.numpy as jnp
from jax.experimental import pallas as pl
from jax.experimental.pallas import tpu as pltpu


def _attention_kernel(scale, tk, nk, k_valid, use_mask, return_p, matmul_dtype,
                      *refs):
    """One (batch, q-tile, k-tile) grid step of flash-style attention."""
    q_ref, k_ref, v_ref = refs[:3]
    i = 3
    mask_ref = refs[i] if use_mask else None
    i += int(use_mask)
    o_ref = refs[i]
    i += 1
    p_ref = refs[i] if return_p else None
    i += int(return_p)
    m_sc, l_sc, acc_sc, q_sc = refs[i:i + 4]
    i += 4
    mhist_sc = refs[i] if return_p else None

    ki = pl.program_id(2)

    @pl.when(ki == 0)
    def _init():
        m_sc[...] = jnp.full(m_sc.shape, -jnp.inf, m_sc.dtype)
        l_sc[...] = jnp.zeros(l_sc.shape, l_sc.dtype)
        acc_sc[...] = jnp.zeros(acc_sc.shape, acc_sc.dtype)
        # Fold 1/sqrt(d) into Q once per q tile (Q block is resident across ki).
        q_sc[...] = (q_ref[...].astype(jnp.float32) * scale).astype(q_sc.dtype)

    # K/V are VMEM-resident per batch: slice the current k tile out of the slab.
    align = 128 if tk % 128 == 0 else tk
    koff = pl.multiple_of(ki * tk, align)
    q = q_sc[...]                                            # (tq, D)
    k = k_ref[pl.ds(koff, tk), :].astype(matmul_dtype)       # (tk, D)
    v = v_ref[pl.ds(koff, tk), :].astype(matmul_dtype)       # (tk, Dv)

    # Scores on the MXU, f32 accumulation; contraction over D (no explicit K.T).
    s = jax.lax.dot_general(q, k, (((1,), (1,)), ((), ())),
                            preferred_element_type=jnp.float32)   # (tq, tk)

    if use_mask:
        # masked_fill_(attn_mask, -1e9)  (bool mask streamed, 1 byte/elem)
        s = jnp.where(mask_ref[...], jnp.float32(-1.0e9), s)
    if k_valid is not None:
        # Mask the zero-padded key columns (sequence padded to a multiple of 128).
        col = jax.lax.broadcasted_iota(jnp.int32, (1, tk), 1) + ki * tk
        s = jnp.where(col >= k_valid, jnp.float32(-jnp.inf), s)

    # ---- online softmax update ----
    m_prev = m_sc[...]                                       # (tq, 1)
    m_new = jnp.maximum(m_prev, jnp.max(s, axis=-1, keepdims=True))
    alpha = jnp.exp(m_prev - m_new)
    e = jnp.exp(s - m_new)                                   # (tq, tk)
    l_sc[...] = alpha * l_sc[...] + jnp.sum(e, axis=-1, keepdims=True)
    # TODO(synk): training-mode dropout on the probabilities (pltpu.prng_seed +
    # stateful_bernoulli) is not implemented; this matches module.eval().
    acc_sc[...] = alpha * acc_sc[...] + jnp.dot(
        e.astype(matmul_dtype), v, preferred_element_type=jnp.float32)
    m_sc[...] = m_new

    if return_p:
        # Single lane-aligned dynamic store of this tile's e into the resident
        # (tq, Sk) attn_p row block (no per-tile unrolled branches).
        if nk > 1:
            p_ref[:, pl.ds(koff, tk)] = e
        else:
            p_ref[...] = e
        # Remember this tile's running max (tiny (tq, 1) store).
        for j in range(nk):
            @pl.when(ki == j)
            def _store_m(j=j):
                mhist_sc[:, j:j + 1] = m_new

    @pl.when(ki == nk - 1)
    def _finalize():
        l = l_sc[...]
        inv_l = pl.reciprocal(l, approx=True)      # EUP vrcp ...
        inv_l = inv_l * (2.0 - l * inv_l)          # ... + one Newton step -> ~f32 exact
        o_ref[...] = (acc_sc[...] * inv_l).astype(o_ref.dtype)
        if return_p:
            # Per-tile correction exp(m_tile - m_final) * inv_l: tq*nk exps + tq*Sk
            # VPU muls instead of a second tq*Sk exp pass over the whole row.
            m_fin = m_sc[...]
            for j in range(nk):
                corr = jnp.exp(mhist_sc[:, j:j + 1] - m_fin) * inv_l
                p_ref[:, j * tk:(j + 1) * tk] = p_ref[:, j * tk:(j + 1) * tk] * corr


def _round_up(x, m):
    return ((x + m - 1) // m) * m


def _pick_tile(dim, candidates, override):
    """Pick (tile, padded_dim): even divisor > full small block > pad to 128-multiple."""
    if override is not None:
        return override, _round_up(dim, override)
    for c in candidates:
        if dim % c == 0:
            return c, dim
    if dim <= 512:
        return dim, dim                      # small / odd: single full block
    p = _round_up(dim, 128)
    for c in candidates:
        if p % c == 0:
            return c, p
    return 128, p


def _vmem_budget_bytes():
    """~3/4 of this generation's VMEM: 96 MiB on v5e/v6e (128 MiB), 48 MiB on v7x (64 MiB)."""
    cap = 64 * 1024 * 1024                   # conservative fallback (v7x-sized)
    try:
        info = pltpu.get_tpu_info()
        c = getattr(info, "vmem_capacity_bytes", None)
        if c:
            cap = int(c)
    except Exception:
        pass
    return int(min(96 * 1024 * 1024, (cap * 3) // 4))


def attention(Q, K, V, attn_mask=None, *, matmul_dtype=None, return_attn_p=True,
              block_q=None, block_k=None, dropout_rate=0.1):
    """Flash-style Pallas attention.

    Q: (B, Sq, D), K: (B, Sk, D), V: (B, Sk, Dv); attn_mask: bool/int (B, Sq, Sk) or None.
    Returns (attn_v, attn_p); attn_p is None when return_attn_p=False.
    matmul_dtype=jnp.bfloat16 is the fast path (bf16 MXU operands, f32 accumulation);
    the default float32 matches the reference module's `K.float()` semantics.
    Outputs are f32, as in the reference.
    """
    del dropout_rate  # eval-mode dropout == identity (see TODO in the kernel)
    B, Sq, D = Q.shape
    _, Sk, _ = K.shape
    Dv = V.shape[-1]

    matmul_dtype = jnp.float32 if matmul_dtype is None else jnp.dtype(matmul_dtype)
    budget = _vmem_budget_bytes()

    tq, Sq_p = _pick_tile(Sq, (256, 128), block_q)
    tk, Sk_p = _pick_tile(Sk, (256, 128), block_k)      # 256 preferred over 512 (MXU N=256)
    nk = Sk_p // tk
    use_mask = attn_mask is not None

    itm = lambda a: jnp.dtype(a.dtype).itemsize
    mm_it = jnp.dtype(matmul_dtype).itemsize

    def _vmem_estimate(tq_):
        by = 2 * tq_ * D * itm(Q)                       # Q block (double-buffered)
        by += 2 * Sk_p * D * itm(K)                     # K resident per batch
        by += 2 * Sk_p * Dv * itm(V)                    # V resident per batch
        if use_mask:
            by += 2 * tq_ * tk                          # bool mask tile
        by += 2 * tq_ * Dv * 4                          # attn_v block
        if return_attn_p:
            by += 2 * tq_ * Sk_p * 4                    # resident attn_p row block
        by += tq_ * (2 * 4 + Dv * 4 + D * mm_it)        # m, l, acc, scaled-Q scratch
        if return_attn_p:
            by += tq_ * nk * 4                          # per-tile max history
        return by

    # Generation-aware q-tile shrink (mostly matters for v7x's 64 MiB VMEM when the
    # resident (tq, Sk) attn_p row block is large).
    while (_vmem_estimate(tq) > budget and tq > 128 and tq % 2 == 0
           and Sq_p % (tq // 2) == 0):
        tq //= 2
    nq = Sq_p // tq

    pad_q, pad_k = Sq_p - Sq, Sk_p - Sk
    k_valid = Sk if pad_k else None
    if pad_q:
        Q = jnp.pad(Q, ((0, 0), (0, pad_q), (0, 0)))
    if pad_k:
        K = jnp.pad(K, ((0, 0), (0, pad_k), (0, 0)))
        V = jnp.pad(V, ((0, 0), (0, pad_k), (0, 0)))

    in_specs = [
        pl.BlockSpec((pl.Squeezed(), tq, D), lambda b, qi, ki: (b, qi, 0)),    # Q: per q tile
        pl.BlockSpec((pl.Squeezed(), Sk_p, D), lambda b, qi, ki: (b, 0, 0)),   # K: resident per batch
        pl.BlockSpec((pl.Squeezed(), Sk_p, Dv), lambda b, qi, ki: (b, 0, 0)),  # V: resident per batch
    ]
    args = [Q, K, V]
    if use_mask:
        m = attn_mask
        if m.dtype != jnp.bool_:
            m = m != 0
        if pad_q or pad_k:
            m = jnp.pad(m, ((0, 0), (0, pad_q), (0, pad_k)))   # pads with False
        in_specs.append(
            pl.BlockSpec((pl.Squeezed(), tq, tk), lambda b, qi, ki: (b, qi, ki)))
        args.append(m)

    # attn_v / attn_p output blocks keep a constant index along the trailing k axis,
    # so they stay resident in VMEM until the finalize step.
    v_spec = pl.BlockSpec((pl.Squeezed(), tq, Dv), lambda b, qi, ki: (b, qi, 0))
    v_shape = jax.ShapeDtypeStruct((B, Sq_p, Dv), jnp.float32)
    scratch = [
        pltpu.VMEM((tq, 1), jnp.float32),     # running max  m
        pltpu.VMEM((tq, 1), jnp.float32),     # running sum  l
        pltpu.VMEM((tq, Dv), jnp.float32),    # un-normalized output accumulator
        pltpu.VMEM((tq, D), matmul_dtype),    # pre-scaled, pre-cast Q tile
    ]
    if return_attn_p:
        out_specs = [v_spec,
                     pl.BlockSpec((pl.Squeezed(), tq, Sk_p), lambda b, qi, ki: (b, qi, 0))]
        out_shape = (v_shape, jax.ShapeDtypeStruct((B, Sq_p, Sk_p), jnp.float32))
        scratch.append(pltpu.VMEM((tq, nk), jnp.float32))   # per-tile running max history
    else:
        out_specs = v_spec
        out_shape = v_shape

    grid_spec = pltpu.PrefetchScalarGridSpec(
        num_scalar_prefetch=0,
        grid=(B, nq, nk),
        in_specs=in_specs,
        out_specs=out_specs,
        scratch_shapes=scratch,
    )

    kernel = functools.partial(_attention_kernel, 1.0 / math.sqrt(D), tk, nk,
                               k_valid, use_mask, return_attn_p, matmul_dtype)

    outs = pl.pallas_call(
        kernel,
        out_shape=out_shape,
        grid_spec=grid_spec,
        compiler_params=pltpu.CompilerParams(
            dimension_semantics=("parallel", "parallel", "arbitrary"),
            vmem_limit_bytes=budget),
    )(*args)

    if return_attn_p:
        attn_v, attn_p = outs
        if pad_q or pad_k:
            attn_p = attn_p[:, :Sq, :Sk]
    else:
        attn_v, attn_p = outs, None
    if pad_q:
        attn_v = attn_v[:, :Sq, :]
    return attn_v, attn_p


if __name__ == "__main__":
    def reference(Q, K, V, mask=None):
        d = Q.shape[-1]
        s = jnp.einsum("bqd,bkd->bqk", Q.astype(jnp.float32), K.astype(jnp.float32))
        s = s / jnp.sqrt(jnp.float32(d))
        if mask is not None:
            s = jnp.where(mask, jnp.float32(-1.0e9), s)
        p = jax.nn.softmax(s, axis=-1)
        v = jnp.einsum("bqk,bkd->bqd", p, V.astype(jnp.float32))
        return v, p

    key = jax.random.PRNGKey(0)

    # Case 1: module-scale shapes (batch=2, seq=8, hidden=32), masked, f32 matmuls.
    B, Sq, Sk, D = 2, 8, 8, 32
    k1, k2, k3, k4, key = jax.random.split(key, 5)
    Q = jax.random.normal(k1, (B, Sq, D), jnp.float32)
    K = jax.random.normal(k2, (B, Sk, D), jnp.float32)
    V = jax.random.normal(k3, (B, Sk, D), jnp.float32)
    mask = jax.random.bernoulli(k4, 0.2, (B, Sq, Sk))

    av, ap = attention(Q, K, V, mask)
    jax.block_until_ready((av, ap))
    rv, rp = reference(Q, K, V, mask)
    assert jnp.allclose(ap, rp, atol=2e-2), "case1 attn_p mismatch"
    assert jnp.allclose(av, rv, atol=2e-2), "case1 attn_v mismatch"

    # Case 2: multi-tile flash path (grid (B, 3, 3) with tq=tk=128), masked, f32.
    B2, S2, D2 = 2, 384, 32
    k1, k2, k3, k4, key = jax.random.split(key, 5)
    Q2 = jax.random.normal(k1, (B2, S2, D2), jnp.float32)
    K2 = jax.random.normal(k2, (B2, S2, D2), jnp.float32)
    V2 = jax.random.normal(k3, (B2, S2, D2), jnp.float32)
    mask2 = jax.random.bernoulli(k4, 0.15, (B2, S2, S2))

    av2, ap2 = attention(Q2, K2, V2, mask2)
    jax.block_until_ready((av2, ap2))
    rv2, rp2 = reference(Q2, K2, V2, mask2)
    assert jnp.allclose(ap2, rp2, atol=2e-2), "case2 attn_p mismatch"
    assert jnp.allclose(av2, rv2, atol=2e-2), "case2 attn_v mismatch"

    # Case 3: no mask (no mask DMA at all), bf16 MXU matmuls, attn_p output skipped.
    av3, none_p = attention(Q, K, V, None, matmul_dtype=jnp.bfloat16,
                            return_attn_p=False)
    jax.block_until_ready(av3)
    rv3, _ = reference(Q, K, V, None)
    assert none_p is None
    assert jnp.allclose(av3, rv3, atol=5e-2), "case3 attn_v mismatch"

    # Case 4: non-128-aligned Sq/Sk through the padded path (explicit block sizes ->
    # padded to (128, 256), padded keys masked in-kernel, outputs sliced back).
    B4, Sq4, Sk4, D4 = 2, 72, 200, 32
    k1, k2, k3, k4, key = jax.random.split(key, 5)
    Q4 = jax.random.normal(k1, (B4, Sq4, D4), jnp.float32)
    K4 = jax.random.normal(k2, (B4, Sk4, D4), jnp.float32)
    V4 = jax.random.normal(k3, (B4, Sk4, D4), jnp.float32)
    mask4 = jax.random.bernoulli(k4, 0.2, (B4, Sq4, Sk4))

    av4, ap4 = attention(Q4, K4, V4, mask4, block_q=64, block_k=128)
    jax.block_until_ready((av4, ap4))
    rv4, rp4 = reference(Q4, K4, V4, mask4)
    assert av4.shape == (B4, Sq4, D4) and ap4.shape == (B4, Sq4, Sk4)
    assert jnp.allclose(ap4, rp4, atol=2e-2), "case4 attn_p mismatch"
    assert jnp.allclose(av4, rv4, atol=2e-2), "case4 attn_v mismatch"

    print("KERNEL_OK")
</pallas_src>

<mosaic_0001>
module attributes {stable_mosaic.version = 11 : i64} {
  func.func @_attention_kernel(%arg0: i32, %arg1: i32, %arg2: i32, %arg3: memref<1x8x32xf32, #tpu.memory_space<vmem>>, %arg4: memref<1x8x32xf32, #tpu.memory_space<vmem>>, %arg5: memref<1x8x32xf32, #tpu.memory_space<vmem>>, %arg6: memref<1x8x8xi32, #tpu.memory_space<vmem>>, %arg7: memref<1x8x32xf32, #tpu.memory_space<vmem>>, %arg8: memref<1x8x8xf32, #tpu.memory_space<vmem>>, %arg9: memref<8x1xf32, #tpu.memory_space<vmem>>, %arg10: memref<8x1xf32, #tpu.memory_space<vmem>>, %arg11: memref<8x32xf32, #tpu.memory_space<vmem>>, %arg12: memref<8x32xf32, #tpu.memory_space<vmem>>, %arg13: memref<8x1xf32, #tpu.memory_space<vmem>>) attributes {dimension_semantics = [#tpu.dimension_semantics<parallel>, #tpu.dimension_semantics<parallel>, #tpu.dimension_semantics<arbitrary>], iteration_bounds = array<i64: 2, 1, 1>, scalar_prefetch = 0 : i64, scratch_operands = 5 : i64, tpu.core_type = #tpu.core_type<tc>, window_params = [{transform_indices = @transform_0, window_bounds = array<i64: 1, 8, 32>}, {transform_indices = @transform_1, window_bounds = array<i64: 1, 8, 32>}, {transform_indices = @transform_2, window_bounds = array<i64: 1, 8, 32>}, {transform_indices = @transform_3, window_bounds = array<i64: 1, 8, 8>}, {transform_indices = @transform_4, window_bounds = array<i64: 1, 8, 32>}, {transform_indices = @transform_5, window_bounds = array<i64: 1, 8, 8>}]} {
    %c0_i32 = arith.constant 0 : i32
    %0 = arith.cmpi eq, %arg2, %c0_i32 : i32
    %1 = arith.extui %0 : i1 to i32
    %c0_i32_0 = arith.constant 0 : i32
    %2 = arith.cmpi ne, %1, %c0_i32_0 : i32
    scf.if %2 {
      %cst_33 = arith.constant 0xFF800000 : f32
      %49 = vector.broadcast %cst_33 : f32 to vector<8x1xf32>
      %c0_34 = arith.constant 0 : index
      %c0_35 = arith.constant 0 : index
      %50 = vector.load %arg9[%c0_34, %c0_35] : memref<8x1xf32, #tpu.memory_space<vmem>>, vector<8x1xf32>
      tpu.vector_store %arg9[%c0_34, %c0_35], %49 {strides = array<i32>} : memref<8x1xf32, #tpu.memory_space<vmem>>, vector<8x1xf32>,
      %cst_36 = arith.constant 0.000000e+00 : f32
      %51 = vector.broadcast %cst_36 : f32 to vector<8x1xf32>
      %c0_37 = arith.constant 0 : index
      %c0_38 = arith.constant 0 : index
      %52 = vector.load %arg10[%c0_37, %c0_38] : memref<8x1xf32, #tpu.memory_space<vmem>>, vector<8x1xf32>
      tpu.vector_store %arg10[%c0_37, %c0_38], %51 {strides = array<i32>} : memref<8x1xf32, #tpu.memory_space<vmem>>, vector<8x1xf32>,
      %cst_39 = arith.constant 0.000000e+00 : f32
      %53 = vector.broadcast %cst_39 : f32 to vector<8x32xf32>
      %c0_40 = arith.constant 0 : index
      %c0_41 = arith.constant 0 : index
      %54 = vector.load %arg11[%c0_40, %c0_41] : memref<8x32xf32, #tpu.memory_space<vmem>>, vector<8x32xf32>
      tpu.vector_store %arg11[%c0_40, %c0_41], %53 {strides = array<i32>} : memref<8x32xf32, #tpu.memory_space<vmem>>, vector<8x32xf32>,
      %c0_42 = arith.constant 0 : index
      %c0_43 = arith.constant 0 : index
      %c0_44 = arith.constant 0 : index
      %55 = vector.load %arg3[%c0_42, %c0_43, %c0_44] : memref<1x8x32xf32, #tpu.memory_space<vmem>>, vector<1x8x32xf32>
      %56 = vector.shape_cast %55 : vector<1x8x32xf32> to vector<8x32xf32>
      %cst_45 = arith.constant 0.176776692 : f32
      %57 = vector.broadcast %cst_45 : f32 to vector<8x32xf32>
      %58 = arith.mulf %56, %57 : vector<8x32xf32>
      %c0_46 = arith.constant 0 : index
      %c0_47 = arith.constant 0 : index
      %59 = vector.load %arg12[%c0_46, %c0_47] : memref<8x32xf32, #tpu.memory_space<vmem>>, vector<8x32xf32>
      tpu.vector_store %arg12[%c0_46, %c0_47], %58 {strides = array<i32>} : memref<8x32xf32, #tpu.memory_space<vmem>>, vector<8x32xf32>,
    } else {
    }
    %c8_i32 = arith.constant 8 : i32
    %3 = arith.muli %arg2, %c8_i32 : i32
    %4 = tpu.assume_multiple %3, 8 : i32
    %c0 = arith.constant 0 : index
    %c0_1 = arith.constant 0 : index
    %5 = vector.load %arg12[%c0, %c0_1] : memref<8x32xf32, #tpu.memory_space<vmem>>, vector<8x32xf32>
    %c0_2 = arith.constant 0 : index
    %6 = arith.index_cast %4 : i32 to index
    %c0_3 = arith.constant 0 : index
    %7 = vector.load %arg4[%c0_2, %6, %c0_3] : memref<1x8x32xf32, #tpu.memory_space<vmem>>, vector<1x8x32xf32>
    %8 = vector.shape_cast %7 : vector<1x8x32xf32> to vector<8x32xf32>
    %c0_4 = arith.constant 0 : index
    %9 = arith.index_cast %4 : i32 to index
    %c0_5 = arith.constant 0 : index
    %10 = vector.load %arg5[%c0_4, %9, %c0_5] : memref<1x8x32xf32, #tpu.memory_space<vmem>>, vector<1x8x32xf32>
    %11 = vector.shape_cast %10 : vector<1x8x32xf32> to vector<8x32xf32>
    %cst = arith.constant dense<0.000000e+00> : vector<8x8xf32>
    %12 = tpu.matmul %5, %8, %cst {dimension_numbers = #tpu.dot_dimension_numbers<[1], [1], [0], [0], [0, 0, 1, 0], [], []>} : vector<8x32xf32>, vector<8x32xf32>, vector<8x8xf32> -> vector<8x8xf32>
    %c0_6 = arith.constant 0 : index
    %c0_7 = arith.constant 0 : index
    %c0_8 = arith.constant 0 : index
    %13 = vector.load %arg6[%c0_6, %c0_7, %c0_8] : memref<1x8x8xi32, #tpu.memory_space<vmem>>, vector<1x8x8xi32>
    %14 = vector.shape_cast %13 : vector<1x8x8xi32> to vector<8x8xi32>
    %cst_9 = arith.constant dense<0> : vector<8x8xi32>
    %15 = arith.cmpi ne, %14, %cst_9 : vector<8x8xi32>
    %cst_10 = arith.constant -1.000000e+09 : f32
    %16 = vector.broadcast %cst_10 : f32 to vector<8x8xf32>
    %17 = arith.select %15, %16, %12 : vector<8x8xi1>, vector<8x8xf32>
    %c0_11 = arith.constant 0 : index
    %c0_12 = arith.constant 0 : index
    %18 = vector.load %arg9[%c0_11, %c0_12] : memref<8x1xf32, #tpu.memory_space<vmem>>, vector<8x1xf32>
    %cst_13 = arith.constant dense<0xFF800000> : vector<8xf32>
    %19 = vector.multi_reduction <maximumf>, %17, %cst_13 [1] : vector<8x8xf32> to vector<8xf32>
    %20 = vector.shape_cast %19 : vector<8xf32> to vector<8x1xf32>
    %21 = arith.maximumf %18, %20 : vector<8x1xf32>
    %22 = arith.subf %18, %21 : vector<8x1xf32>
    %23 = math.exp %22 : vector<8x1xf32>
    %24 = vector.broadcast %21 : vector<8x1xf32> to vector<8x8xf32>
    %25 = arith.subf %17, %24 : vector<8x8xf32>
    %26 = math.exp %25 : vector<8x8xf32>
    %c0_14 = arith.constant 0 : index
    %c0_15 = arith.constant 0 : index
    %27 = vector.load %arg10[%c0_14, %c0_15] : memref<8x1xf32, #tpu.memory_space<vmem>>, vector<8x1xf32>
    %28 = arith.mulf %23, %27 : vector<8x1xf32>
    %cst_16 = arith.constant dense<0.000000e+00> : vector<8xf32>
    %29 = vector.multi_reduction <add>, %26, %cst_16 [1] : vector<8x8xf32> to vector<8xf32>
    %30 = vector.shape_cast %29 : vector<8xf32> to vector<8x1xf32>
    %31 = arith.addf %28, %30 : vector<8x1xf32>
    %c0_17 = arith.constant 0 : index
    %c0_18 = arith.constant 0 : index
    %32 = vector.load %arg10[%c0_17, %c0_18] : memref<8x1xf32, #tpu.memory_space<vmem>>, vector<8x1xf32>
    tpu.vector_store %arg10[%c0_17, %c0_18], %31 {strides = array<i32>} : memref<8x1xf32, #tpu.memory_space<vmem>>, vector<8x1xf32>,
    %c0_19 = arith.constant 0 : index
    %c0_20 = arith.constant 0 : index
    %33 = vector.load %arg11[%c0_19, %c0_20] : memref<8x32xf32, #tpu.memory_space<vmem>>, vector<8x32xf32>
    %34 = vector.broadcast %23 : vector<8x1xf32> to vector<8x32xf32>
    %35 = arith.mulf %34, %33 : vector<8x32xf32>
    %cst_21 = arith.constant dense<0.000000e+00> : vector<8x32xf32>
    %36 = tpu.matmul %26, %11, %cst_21 {dimension_numbers = #tpu.dot_dimension_numbers<[1], [0], [0], [1], [0, 0, 1, 1], [], []>} : vector<8x8xf32>, vector<8x32xf32>, vector<8x32xf32> -> vector<8x32xf32>
    %37 = arith.addf %35, %36 : vector<8x32xf32>
    %c0_22 = arith.constant 0 : index
    %c0_23 = arith.constant 0 : index
    %38 = vector.load %arg11[%c0_22, %c0_23] : memref<8x32xf32, #tpu.memory_space<vmem>>, vector<8x32xf32>
    tpu.vector_store %arg11[%c0_22, %c0_23], %37 {strides = array<i32>} : memref<8x32xf32, #tpu.memory_space<vmem>>, vector<8x32xf32>,
    %c0_24 = arith.constant 0 : index
    %c0_25 = arith.constant 0 : index
    %39 = vector.load %arg9[%c0_24, %c0_25] : memref<8x1xf32, #tpu.memory_space<vmem>>, vector<8x1xf32>
    tpu.vector_store %arg9[%c0_24, %c0_25], %21 {strides = array<i32>} : memref<8x1xf32, #tpu.memory_space<vmem>>, vector<8x1xf32>,
    %c0_26 = arith.constant 0 : index
    %c0_27 = arith.constant 0 : index
    %c0_28 = arith.constant 0 : index
    %40 = vector.load %arg8[%c0_26, %c0_27, %c0_28] : memref<1x8x8xf32, #tpu.memory_space<vmem>>, vector<1x8x8xf32>
    %41 = vector.shape_cast %40 : vector<1x8x8xf32> to vector<8x8xf32>
    %42 = vector.shape_cast %26 : vector<8x8xf32> to vector<1x8x8xf32>
    tpu.vector_store %arg8[%c0_26, %c0_27, %c0_28], %42 {strides = array<i32>} : memref<1x8x8xf32, #tpu.memory_space<vmem>>, vector<1x8x8xf32>,
    %c0_i32_29 = arith.constant 0 : i32
    %43 = arith.cmpi eq, %arg2, %c0_i32_29 : i32
    %44 = arith.extui %43 : i1 to i32
    %c0_i32_30 = arith.constant 0 : i32
    %45 = arith.cmpi ne, %44, %c0_i32_30 : i32
    scf.if %45 {
      %c0_33 = arith.constant 0 : index
      %c0_34 = arith.constant 0 : index
      %49 = vector.load %arg13[%c0_33, %c0_34] : memref<8x1xf32, #tpu.memory_space<vmem>>, vector<8x1xf32>
      tpu.vector_store %arg13[%c0_33, %c0_34], %21 {strides = array<i32>} : memref<8x1xf32, #tpu.memory_space<vmem>>, vector<8x1xf32>,
    } else {
    }
    %c0_i32_31 = arith.constant 0 : i32
    %46 = arith.cmpi eq, %arg2, %c0_i32_31 : i32
    %47 = arith.extui %46 : i1 to i32
    %c0_i32_32 = arith.constant 0 : i32
    %48 = arith.cmpi ne, %47, %c0_i32_32 : i32
    scf.if %48 {
      %c0_33 = arith.constant 0 : index
      %c0_34 = arith.constant 0 : index
      %49 = vector.load %arg10[%c0_33, %c0_34] : memref<8x1xf32, #tpu.memory_space<vmem>>, vector<8x1xf32>
      %50 = tpu.reciprocal %49 {approx = true} : vector<8x1xf32> -> vector<8x1xf32>
      %51 = arith.mulf %49, %50 : vector<8x1xf32>
      %cst_35 = arith.constant 2.000000e+00 : f32
      %52 = vector.broadcast %cst_35 : f32 to vector<8x1xf32>
      %53 = arith.subf %52, %51 : vector<8x1xf32>
      %54 = arith.mulf %50, %53 : vector<8x1xf32>
      %c0_36 = arith.constant 0 : index
      %c0_37 = arith.constant 0 : index
      %55 = vector.load %arg11[%c0_36, %c0_37] : memref<8x32xf32, #tpu.memory_space<vmem>>, vector<8x32xf32>
      %56 = vector.broadcast %54 : vector<8x1xf32> to vector<8x32xf32>
      %57 = arith.mulf %55, %56 : vector<8x32xf32>
      %c0_38 = arith.constant 0 : index
      %c0_39 = arith.constant 0 : index
      %c0_40 = arith.constant 0 : index
      %58 = vector.load %arg7[%c0_38, %c0_39, %c0_40] : memref<1x8x32xf32, #tpu.memory_space<vmem>>, vector<1x8x32xf32>
      %59 = vector.shape_cast %58 : vector<1x8x32xf32> to vector<8x32xf32>
      %60 = vector.shape_cast %57 : vector<8x32xf32> to vector<1x8x32xf32>
      tpu.vector_store %arg7[%c0_38, %c0_39, %c0_40], %60 {strides = array<i32>} : memref<1x8x32xf32, #tpu.memory_space<vmem>>, vector<1x8x32xf32>,
      %c0_41 = arith.constant 0 : index
      %c0_42 = arith.constant 0 : index
      %61 = vector.load %arg9[%c0_41, %c0_42] : memref<8x1xf32, #tpu.memory_space<vmem>>, vector<8x1xf32>
      %c0_43 = arith.constant 0 : index
      %c0_44 = arith.constant 0 : index
      %62 = vector.load %arg13[%c0_43, %c0_44] : memref<8x1xf32, #tpu.memory_space<vmem>>, vector<8x1xf32>
      %63 = arith.subf %62, %61 : vector<8x1xf32>
      %64 = math.exp %63 : vector<8x1xf32>
      %65 = arith.mulf %64, %54 : vector<8x1xf32>
      %c0_45 = arith.constant 0 : index
      %c0_46 = arith.constant 0 : index
      %c0_47 = arith.constant 0 : index
      %66 = vector.load %arg8[%c0_45, %c0_46, %c0_47] : memref<1x8x8xf32, #tpu.memory_space<vmem>>, vector<1x8x8xf32>
      %67 = vector.shape_cast %66 : vector<1x8x8xf32> to vector<8x8xf32>
      %68 = vector.broadcast %65 : vector<8x1xf32> to vector<8x8xf32>
      %69 = arith.mulf %67, %68 : vector<8x8xf32>
      %c0_48 = arith.constant 0 : index
      %c0_49 = arith.constant 0 : index
      %c0_50 = arith.constant 0 : index
      %70 = vector.load %arg8[%c0_48, %c0_49, %c0_50] : memref<1x8x8xf32, #tpu.memory_space<vmem>>, vector<1x8x8xf32>
      %71 = vector.shape_cast %70 : vector<1x8x8xf32> to vector<8x8xf32>
      %72 = vector.shape_cast %69 : vector<8x8xf32> to vector<1x8x8xf32>
      tpu.vector_store %arg8[%c0_48, %c0_49, %c0_50], %72 {strides = array<i32>} : memref<1x8x8xf32, #tpu.memory_space<vmem>>, vector<1x8x8xf32>,
    } else {
    }
    return
  }
  func.func @transform_0(%arg0: i32, %arg1: i32, %arg2: i32) -> (i32, i32, i32) {
    %c0_i32 = arith.constant 0 : i32
    %c0_i32_0 = arith.constant 0 : i32
    return %arg0, %arg1, %c0_i32 : i32, i32, i32
  }
  func.func @transform_1(%arg0: i32, %arg1: i32, %arg2: i32) -> (i32, i32, i32) {
    %c0_i32 = arith.constant 0 : i32
    %c0_i32_0 = arith.constant 0 : i32
    %c0_i32_1 = arith.constant 0 : i32
    return %arg0, %c0_i32, %c0_i32_0 : i32, i32, i32
  }
  func.func @transform_2(%arg0: i32, %arg1: i32, %arg2: i32) -> (i32, i32, i32) {
    %c0_i32 = arith.constant 0 : i32
    %c0_i32_0 = arith.constant 0 : i32
    %c0_i32_1 = arith.constant 0 : i32
    return %arg0, %c0_i32, %c0_i32_0 : i32, i32, i32
  }
  func.func @transform_3(%arg0: i32, %arg1: i32, %arg2: i32) -> (i32, i32, i32) {
    %c0_i32 = arith.constant 0 : i32
    return %arg0, %arg1, %arg2 : i32, i32, i32
  }
  func.func @transform_4(%arg0: i32, %arg1: i32, %arg2: i32) -> (i32, i32, i32) {
    %c0_i32 = arith.constant 0 : i32
    %c0_i32_0 = arith.constant 0 : i32
    return %arg0, %arg1, %c0_i32 : i32, i32, i32
  }
  func.func @transform_5(%arg0: i32, %arg1: i32, %arg2: i32) -> (i32, i32, i32) {
    %c0_i32 = arith.constant 0 : i32
    %c0_i32_0 = arith.constant 0 : i32
    return %arg0, %arg1, %c0_i32 : i32, i32, i32
  }
}

</mosaic_0001>

<llo_original>
// kernel: tpu_custom_call.1
$region0: #{tpu_custom_call.1}
  #allocation0 [shape = 'u32[]', space=smem, size = 0x4, offset = 0x4, fixed_abs, tag = 'smem constant byte address 0x4 - core index']
  #allocation1 [shape = 'u32[144,128]{1,0:T(1,128)}', space=vmem, size = 0x12000, scoped, tag = 'internal scratch']
  #allocation2 [shape = 'f32[8,1]{1,0:T(8,128)}', space=vmem, size = 0x1000, scoped, tag = 'scratch operand']
  #allocation3 [shape = 'f32[8,1]{1,0:T(8,128)}', space=vmem, size = 0x1000, scoped, tag = 'scratch operand']
  #allocation4 [shape = 'f32[8,32]{1,0:T(8,128)}', space=vmem, size = 0x1000, scoped, tag = 'scratch operand']
  #allocation5 [shape = 'f32[8,32]{1,0:T(8,128)}', space=vmem, size = 0x1000, scoped, tag = 'scratch operand']
  #allocation6 [shape = 'f32[8,1]{1,0:T(8,128)}', space=vmem, size = 0x1000, scoped, tag = 'scratch operand']
  %s0 = inlined_call_operand.vmem [shape: f32[2,8,32], index: 0, kind: input, shape index: {}]
  %s1 = inlined_call_operand.hbm [shape: f32[2,8,32], index: 1, kind: input, shape index: {}]
  %s2 = inlined_call_operand.hbm [shape: f32[2,8,32], index: 2, kind: input, shape index: {}]
  %s3 = inlined_call_operand.vmem [shape: s32[2,8,8], index: 3, kind: input, shape index: {}]
  %s4 = inlined_call_operand.hbm [shape: f32[2,8,32], index: 4, kind: output, shape index: {0}]
  %s5 = inlined_call_operand.hbm [shape: f32[2,8,8], index: 5, kind: output, shape index: {1}]
  %6 = xla_tuple %s4, %s5
  %s7 = sld [smem:[#allocation0]]
  $region73: #{tpu_custom_call.1} parent=0
    _
  %s9 = ssub.s32 1, %s7
  %s10 = scalar_select 0, %s9, %s7
  $region1: #{tpu_custom_call.1} parent=0
    #allocation7 [shape = 'u8[8192]{0}', space=vmem, size = 0x2000, scoped, tag = 'input window, operand 1']
    #allocation8 [shape = 's32[2]{0}', space=sflag, size = 0x8, scoped, tag = 'scoped memory for tpu_custom_call.1']
    #allocation9 [shape = 's32[2]{0}', space=sflag, size = 0x8, scoped, tag = 'scoped memory for tpu_custom_call.1']
    #allocation10 [shape = 'u8[8192]{0}', space=vmem, size = 0x2000, scoped, tag = 'input window, operand 2']
    #allocation11 [shape = 's32[2]{0}', space=sflag, size = 0x8, scoped, tag = 'scoped memory for tpu_custom_call.1']
    #allocation12 [shape = 'u8[8192]{0}', space=vmem, size = 0x2000, scoped, tag = 'output window, operand 0']
    #allocation13 [shape = 'u8[8192]{0}', space=vmem, size = 0x2000, scoped, tag = 'output window, operand 1']
    #allocation14 [shape = 's32[2]{0}', space=sflag, size = 0x8, scoped, tag = 'scoped memory for tpu_custom_call.1']
    %11 = vsyncpa [#allocation8], 0
    %s12 = scalar_lea.sflag [#allocation8], 1
    %13 = vsyncpa %s12, 0
    %14 = vsyncpa [#allocation11], 0
    %s15 = scalar_lea.sflag [#allocation11], 1
    %16 = vsyncpa %s15, 0
    %17 = vsyncpa [#allocation9], 0
    %s18 = scalar_lea.sflag [#allocation9], 1
    %19 = vsyncpa %s18, 0
    %20 = vsyncpa [#allocation14], 0
    %s21 = scalar_lea.sflag [#allocation14], 1
    %22 = vsyncpa %s21, 0
    loop: start=0, step=1, limit=4
    $region2: #{tpu_custom_call.1} parent=1 // loop_pre_header
      _
    $region3: #{tpu_custom_call.1} parent=1 // loop_header
      %s24 = sphi 0, %s28
      %p25 = scmp.ge.s32.totalorder %s24, 4
      %s31 = sphi 0, %s50
      %s32 = sphi 0, %s46
      %s33 = sphi 0, %s42
      %s34 = sphi 0, %s31
      %s35 = sphi 0, %s32
      %s36 = sphi 0, %s33
      %s37 = sphi 0, %s34
      %s38 = sphi 0, %s35
      %s39 = sphi 0, %s36
      %s55 = sphi 0, %s57
      %s58 = sphi 0, %s55
      %s59 = sphi 0, %s58
      %s75 = sphi 0, %s59
      %s81 = sphi 0, %s83
      %s84 = sphi 0, %s81
      %s85 = sphi 0, %s84
      %s101 = sphi 0, %s85
      %s107 = sphi 0, %s109
      %s110 = sphi 0, %s107
      %s111 = sphi 0, %s110
      %s127 = sphi 0, %s111
      %s137 = sphi 0, %s139
      %s140 = sphi 0, %s137
      %s141 = sphi 0, %s140
      %s157 = sphi 0, %s141
      %s165 = sphi 0, %s167
      %s168 = sphi 0, %s165
      %s169 = sphi 0, %s168
      %s185 = sphi 0, %s169
      %s193 = sphi 0, %s195
      %s196 = sphi 0, %s193
      %s197 = sphi 0, %s196
      %s213 = sphi 0, %s197
    $region4: #{tpu_custom_call.1} parent=1 // loop_header_branch
      %27 = sbr.rel (%p25) target = $region8
    $region5: #{tpu_custom_call.1} parent=1 // loop_body
      %s29 = ssub.s32 %s24, 1
      %s30 = ssub.s32 %s24, 2
      %s40 = sadd.s32 1, %s33
      %p41 = scmp.ge.s32.totalorder %s40, 1
      %s42 = scalar_select %p41, 0, %s40
      %s43 = sadd.s32 1, %s32
      %s44 = scalar_select %p41, %s43, %s32
      %p45 = scmp.ge.s32.totalorder %s44, 1
      %s46 = scalar_select %p45, 0, %s44
      %s47 = sadd.s32 1, %s31
      %s48 = scalar_select %p45, %s47, %s31
      %p49 = scmp.ge.s32.totalorder %s48, 2
      %s50 = scalar_select %p49, 0, %s48
      %s51 = ssub.s32 %s31, %s50
      %s52 = ssub.s32 %s32, %s46
      %s53 = sor.u32 %s51, %s52
      %p54 = scmp.eq.s32.totalorder %s53, 0
      %s56 = sadd.s32 %s55, 1
      %s57 = scalar_select %p54, %s55, %s56
      %p60 = pneg %p54
      %p61 = scmp.eq.s32.totalorder %s24, 1
      %p62 = por %p60, %p61
      %p63 = scmp.ne.s32.totalorder %s55, %s58
      %p64 = scmp.eq.s32.totalorder %s24, 0
      %p65 = por %p63, %p64
      %p66 = scmp.ne.s32.totalorder %s55, %s58
      %p67 = scmp.eq.s32.totalorder %s29, 1
      %p68 = por %p66, %p67
      %p69 = scmp.ne.s32.totalorder %s58, %s59
      %p70 = scmp.eq.s32.totalorder %s29, 0
      %p71 = por %p69, %p70
      %p72 = scmp.ne.s32.totalorder %s58, %s59
      %p73 = scmp.eq.s32.totalorder %s30, 1
      %p74 = por %p72, %p73
      %p76 = scmp.ne.s32.totalorder %s59, %s75
      %p77 = scmp.eq.s32.totalorder %s30, 0
      %p78 = por %p76, %p77
      %s79 = ssub.s32 %s31, %s50
      %p80 = scmp.eq.s32.totalorder %s79, 0
      %s82 = sadd.s32 %s81, 1
      %s83 = scalar_select %p80, %s81, %s82
      %p86 = pneg %p80
      %p87 = scmp.eq.s32.totalorder %s24, 1
      %p88 = por %p86, %p87
      %p89 = scmp.ne.s32.totalorder %s81, %s84
      %p90 = scmp.eq.s32.totalorder %s24, 0
      %p91 = por %p89, %p90
      %p92 = scmp.ne.s32.totalorder %s81, %s84
      %p93 = scmp.eq.s32.totalorder %s29, 1
      %p94 = por %p92, %p93
      %p95 = scmp.ne.s32.totalorder %s84, %s85
      %p96 = scmp.eq.s32.totalorder %s29, 0
      %p97 = por %p95, %p96
      %p98 = scmp.ne.s32.totalorder %s84, %s85
      %p99 = scmp.eq.s32.totalorder %s30, 1
      %p100 = por %p98, %p99
      %p102 = scmp.ne.s32.totalorder %s85, %s101
      %p103 = scmp.eq.s32.totalorder %s30, 0
      %p104 = por %p102, %p103
      %s105 = ssub.s32 %s31, %s50
      %p106 = scmp.eq.s32.totalorder %s105, 0
      %s108 = sadd.s32 %s107, 1
      %s109 = scalar_select %p106, %s107, %s108
      %p112 = pneg %p106
      %p113 = scmp.eq.s32.totalorder %s24, 1
      %p114 = por %p112, %p113
      %p115 = scmp.ne.s32.totalorder %s107, %s110
      %p116 = scmp.eq.s32.totalorder %s24, 0
      %p117 = por %p115, %p116
      %p118 = scmp.ne.s32.totalorder %s107, %s110
      %p119 = scmp.eq.s32.totalorder %s29, 1
      %p120 = por %p118, %p119
      %p121 = scmp.ne.s32.totalorder %s110, %s111
      %p122 = scmp.eq.s32.totalorder %s29, 0
      %p123 = por %p121, %p122
      %p124 = scmp.ne.s32.totalorder %s110, %s111
      %p125 = scmp.eq.s32.totalorder %s30, 1
      %p126 = por %p124, %p125
      %p128 = scmp.ne.s32.totalorder %s111, %s127
      %p129 = scmp.eq.s32.totalorder %s30, 0
      %p130 = por %p128, %p129
      %s131 = ssub.s32 %s31, %s50
      %s132 = ssub.s32 %s32, %s46
      %s133 = sor.u32 %s131, %s132
      %s134 = ssub.s32 %s33, %s42
      %s135 = sor.u32 %s133, %s134
      %p136 = scmp.eq.s32.totalorder %s135, 0
      %s138 = sadd.s32 %s137, 1
      %s139 = scalar_select %p136, %s137, %s138
      %p142 = pneg %p136
      %p143 = scmp.eq.s32.totalorder %s24, 1
      %p144 = por %p142, %p143
      %p145 = scmp.ne.s32.totalorder %s137, %s140
      %p146 = scmp.eq.s32.totalorder %s24, 0
      %p147 = por %p145, %p146
      %p148 = scmp.ne.s32.totalorder %s137, %s140
      %p149 = scmp.eq.s32.totalorder %s29, 1
      %p150 = por %p148, %p149
      %p151 = scmp.ne.s32.totalorder %s140, %s141
      %p152 = scmp.eq.s32.totalorder %s29, 0
      %p153 = por %p151, %p152
      %p154 = scmp.ne.s32.totalorder %s140, %s141
      %p155 = scmp.eq.s32.totalorder %s30, 1
      %p156 = por %p154, %p155
      %p158 = scmp.ne.s32.totalorder %s141, %s157
      %p159 = scmp.eq.s32.totalorder %s30, 0
      %p160 = por %p158, %p159
      %s161 = ssub.s32 %s31, %s50
      %s162 = ssub.s32 %s32, %s46
      %s163 = sor.u32 %s161, %s162
      %p164 = scmp.eq.s32.totalorder %s163, 0
      %s166 = sadd.s32 %s165, 1
      %s167 = scalar_select %p164, %s165, %s166
      %p170 = pneg %p164
      %p171 = scmp.eq.s32.totalorder %s24, 1
      %p172 = por %p170, %p171
      %p173 = scmp.ne.s32.totalorder %s165, %s168
      %p174 = scmp.eq.s32.totalorder %s24, 0
      %p175 = por %p173, %p174
      %p176 = scmp.ne.s32.totalorder %s165, %s168
      %p177 = scmp.eq.s32.totalorder %s29, 1
      %p178 = por %p176, %p177
      %p179 = scmp.ne.s32.totalorder %s168, %s169
      %p180 = scmp.eq.s32.totalorder %s29, 0
      %p181 = por %p179, %p180
      %p182 = scmp.ne.s32.totalorder %s168, %s169
      %p183 = scmp.eq.s32.totalorder %s30, 1
      %p184 = por %p182, %p183
      %p186 = scmp.ne.s32.totalorder %s169, %s185
      %p187 = scmp.eq.s32.totalorder %s30, 0
      %p188 = por %p186, %p187
      %s189 = ssub.s32 %s31, %s50
      %s190 = ssub.s32 %s32, %s46
      %s191 = sor.u32 %s189, %s190
      %p192 = scmp.eq.s32.totalorder %s191, 0
      %s194 = sadd.s32 %s193, 1
      %s195 = scalar_select %p192, %s193, %s194
      %p198 = pneg %p192
      %p199 = scmp.eq.s32.totalorder %s24, 1
      %p200 = por %p198, %p199
      %p201 = scmp.ne.s32.totalorder %s193, %s196
      %p202 = scmp.eq.s32.totalorder %s24, 0
      %p203 = por %p201, %p202
      %p204 = scmp.ne.s32.totalorder %s193, %s196
      %p205 = scmp.eq.s32.totalorder %s29, 1
      %p206 = por %p204, %p205
      %p207 = scmp.ne.s32.totalorder %s196, %s197
      %p208 = scmp.eq.s32.totalorder %s29, 0
      %p209 = por %p207, %p208
      %p210 = scmp.ne.s32.totalorder %s196, %s197
      %p211 = scmp.eq.s32.totalorder %s30, 1
      %p212 = por %p210, %p211
      %p214 = scmp.ne.s32.totalorder %s197, %s213
      %p215 = scmp.eq.s32.totalorder %s30, 0
      %p216 = por %p214, %p215
      %p217 = scmp.le.s32.totalorder 1, %s24
      %p218 = scmp.lt.s32.totalorder %s24, 3
      %p219 = pnand %p217, %p218
      %p220 = pneg %p219
      // Predicated region
      $region9: #{tpu_custom_call.1} parent=5 // pred_check
        _
      $region10: #{tpu_custom_call.1} parent=5 // pred_check_branch
        %222 = sbr.rel (%p219) target = $region12
      $region11: #{tpu_custom_call.1} parent=5 // pred_region
        %s223 = ssub.s32 %s24, 1
      $region12: #{tpu_custom_call.1} parent=5 // pred_fallthru
        _
      %p224 = scmp.lt.s32.totalorder %s24, 2
      // Predicated region
      $region13: #{tpu_custom_call.1} parent=5 // pred_check
        %p225 = pneg %p224
      $region14: #{tpu_custom_call.1} parent=5 // pred_check_branch
        %227 = sbr.rel (%p225) target = $region16
      $region15: #{tpu_custom_call.1} parent=5 // pred_region
        // Predicated region
        $region17: #{tpu_custom_call.1} parent=15 // pred_check
          %p228 = pneg %p65
        $region18: #{tpu_custom_call.1} parent=15 // pred_check_branch
          %230 = sbr.rel (%p228) target = $region20
        $region19: #{tpu_custom_call.1} parent=15 // pred_region
          %p231 = scmp.lt.s32.totalorder %s31, 1
          %s232 = scalar_select %p231, %s31, 1
          %p233 = scmp.lt.s32.totalorder %s32, 0
          %s234 = scalar_select %p233, %s32, 0
          %s235 = sadd.s32 %s234, %s232
          %s236 = smul.addr %s235, 8
          %s237 = scalar_lea.vmem %s0, %s236
        $region20: #{tpu_custom_call.1} parent=15 // pred_fallthru
          _
        // Predicated region
        $region21: #{tpu_custom_call.1} parent=15 // pred_check
          %p238 = pneg %p91
        $region22: #{tpu_custom_call.1} parent=15 // pred_check_branch
          %240 = sbr.rel (%p238) target = $region24
        $region23: #{tpu_custom_call.1} parent=15 // pred_region
          %s241 = sand.u32 %s81, 1
          %s242 = scalar_lea.sflag [#allocation8], %s241
          %s243 = sand.u32 %s81, 1
          %s244 = smul.addr %s243, 8
          %s245 = scalar_lea.vmem [#allocation7], %s244
          %s247 = ssub.s32 128, 128
          %248 = vsyncadd %s242, %s247
          %s249 = smul.addr %s31, 128
          %s250 = scalar_lea.hbm %s1, %s249
          %s252 = sshll.u32 %s245, 4
          %s253 = int_to_ptr.vmem [resolvable:$true] %s252
          %255 = dma.hbm_to_vmem [thread:$0]  %s250, 128, %s253, %s242
        $region24: #{tpu_custom_call.1} parent=15 // pred_fallthru
          _
        // Predicated region
        $region25: #{tpu_custom_call.1} parent=15 // pred_check
          %p256 = pneg %p117
        $region26: #{tpu_custom_call.1} parent=15 // pred_check_branch
          %258 = sbr.rel (%p256) target = $region28
        $region27: #{tpu_custom_call.1} parent=15 // pred_region
          %s259 = sand.u32 %s107, 1
          %s260 = scalar_lea.sflag [#allocation11], %s259
          %s261 = sand.u32 %s107, 1
          %s262 = smul.addr %s261, 8
          %s263 = scalar_lea.vmem [#allocation10], %s262
          %s265 = ssub.s32 128, 128
          %266 = vsyncadd %s260, %s265
          %s267 = smul.addr %s31, 128
          %s268 = scalar_lea.hbm %s2, %s267
          %s270 = sshll.u32 %s263, 4
          %s271 = int_to_ptr.vmem [resolvable:$true] %s270
          %273 = dma.hbm_to_vmem [thread:$0]  %s268, 128, %s271, %s260
        $region28: #{tpu_custom_call.1} parent=15 // pred_fallthru
          _
        // Predicated region
        $region29: #{tpu_custom_call.1} parent=15 // pred_check
          %p274 = pneg %p147
        $region30: #{tpu_custom_call.1} parent=15 // pred_check_branch
          %276 = sbr.rel (%p274) target = $region32
        $region31: #{tpu_custom_call.1} parent=15 // pred_region
          %p277 = scmp.lt.s32.totalorder %s31, 1
          %s278 = scalar_select %p277, %s31, 1
          %p279 = scmp.lt.s32.totalorder %s32, 0
          %s280 = scalar_select %p279, %s32, 0
          %p281 = scmp.lt.s32.totalorder %s33, 0
          %s282 = scalar_select %p281, %s33, 0
          %s283 = sadd.s32 %s282, %s280
          %s284 = sadd.s32 %s283, %s278
          %s285 = smul.addr %s284, 8
          %s286 = scalar_lea.vmem %s3, %s285
        $region32: #{tpu_custom_call.1} parent=15 // pred_fallthru
          _
      $region16: #{tpu_custom_call.1} parent=5 // pred_fallthru
        _
      %p287 = scmp.le.s32.totalorder 1, %s24
      %p288 = scmp.lt.s32.totalorder %s24, 3
      %p289 = pnand %p287, %p288
      %p290 = pneg %p289
      // Predicated region
      $region33: #{tpu_custom_call.1} parent=5 // pred_check
        _
      $region34: #{tpu_custom_call.1} parent=5 // pred_check_branch
        %292 = sbr.rel (%p289) target = $region36
      $region35: #{tpu_custom_call.1} parent=5 // pred_region
        %s293 = ssub.s32 %s24, 1
        %s294 = sand.u32 %s84, 1
        %s295 = scalar_lea.sflag [#allocation8], %s294
        %s296 = sand.u32 %s84, 1
        %s297 = smul.addr %s296, 8
        %s298 = scalar_lea.vmem [#allocation7], %s297
        // Predicated region
        $region37: #{tpu_custom_call.1} parent=35 // pred_check
          %p299 = pneg %p97
        $region38: #{tpu_custom_call.1} parent=35 // pred_check_branch
          %301 = sbr.rel (%p299) target = $region40
        $region39: #{tpu_custom_call.1} parent=35 // pred_region
          %302 = dma.done %s295, 128
        $region40: #{tpu_custom_call.1} parent=35 // pred_fallthru
          _
        %s303 = sand.u32 %s110, 1
        %s304 = scalar_lea.sflag [#allocation11], %s303
        %s305 = sand.u32 %s110, 1
        %s306 = smul.addr %s305, 8
        %s307 = scalar_lea.vmem [#allocation10], %s306
        // Predicated region
        $region41: #{tpu_custom_call.1} parent=35 // pred_check
          %p308 = pneg %p123
        $region42: #{tpu_custom_call.1} parent=35 // pred_check_branch
          %310 = sbr.rel (%p308) target = $region44
        $region43: #{tpu_custom_call.1} parent=35 // pred_region
          %311 = dma.done %s304, 128
        $region44: #{tpu_custom_call.1} parent=35 // pred_fallthru
          _
        %p312 = scmp.lt.s32.totalorder %s34, 1
        %s313 = scalar_select %p312, %s34, 1
        %p314 = scmp.lt.s32.totalorder %s35, 0
        %s315 = scalar_select %p314, %s35, 0
        %s316 = sadd.s32 %s315, %s313
        %s317 = smul.addr %s316, 8
        %s318 = scalar_lea.vmem %s0, %s317
        %p319 = pneg %p71
        %p320 = pneg %p68
        %s321 = sand.u32 %s84, 1
        %s322 = scalar_lea.sflag [#allocation8], %s321
        %s323 = sand.u32 %s84, 1
        %s324 = smul.addr %s323, 8
        %s325 = scalar_lea.vmem [#allocation7], %s324
        %p326 = pneg %p97
        %p327 = pneg %p94
        %s328 = sand.u32 %s110, 1
        %s329 = scalar_lea.sflag [#allocation11], %s328
        %s330 = sand.u32 %s110, 1
        %s331 = smul.addr %s330, 8
        %s332 = scalar_lea.vmem [#allocation10], %s331
        %p333 = pneg %p123
        %p334 = pneg %p120
        %p335 = scmp.lt.s32.totalorder %s34, 1
        %s336 = scalar_select %p335, %s34, 1
        %p337 = scmp.lt.s32.totalorder %s35, 0
        %s338 = scalar_select %p337, %s35, 0
        %p339 = scmp.lt.s32.totalorder %s36, 0
        %s340 = scalar_select %p339, %s36, 0
        %s341 = sadd.s32 %s340, %s338
        %s342 = sadd.s32 %s341, %s336
        %s343 = smul.addr %s342, 8
        %s344 = scalar_lea.vmem %s3, %s343
        %p345 = pneg %p153
        %p346 = pneg %p150
        %p347 = pneg %p181
        %p348 = pneg %p178
        %s349 = sand.u32 %s168, 1
        %s350 = scalar_lea.sflag [#allocation9], %s349
        %s351 = sand.u32 %s168, 1
        %s352 = smul.addr %s351, 8
        %s353 = scalar_lea.vmem [#allocation12], %s352
        %p354 = pneg %p209
        %p355 = pneg %p206
        %s356 = sand.u32 %s196, 1
        %s357 = scalar_lea.sflag [#allocation14], %s356
        %s358 = sand.u32 %s196, 1
        %s359 = smul.addr %s358, 8
        %s360 = scalar_lea.vmem [#allocation13], %s359
        %p361 = scmp.lt.s32.totalorder %s34, 1
        %s362 = scalar_select %p361, %s34, 1
        %p363 = scmp.lt.s32.totalorder %s35, 0
        %s364 = scalar_select %p363, %s35, 0
        %s365 = sadd.s32 %s364, %s362
        %s366 = smul.addr %s365, 8
        %s367 = scalar_lea.vmem %s0, %s366
        %p368 = scmp.lt.s32.totalorder %s34, 1
        %s369 = scalar_select %p368, %s34, 1
        %p370 = scmp.lt.s32.totalorder %s35, 0
        %s371 = scalar_select %p370, %s35, 0
        %p372 = scmp.lt.s32.totalorder %s36, 0
        %s373 = scalar_select %p372, %s36, 0
        %s374 = sadd.s32 %s373, %s371
        %s375 = sadd.s32 %s374, %s369
        %s376 = smul.addr %s375, 8
        %s377 = scalar_lea.vmem %s3, %s376
        %p378 = scmp.eq.s32.totalorder %s36, 0
        // Predicated region
        $region45: #{tpu_custom_call.1} parent=35 // pred_check
          %p379 = pneg %p378
        $region46: #{tpu_custom_call.1} parent=35 // pred_check_branch
          %381 = sbr.rel (%p379) target = $region48
        $region47: #{tpu_custom_call.1} parent=35 // pred_region
          %vm382 = vcmask 7168
          %383 = vst.msk [vmem:[#allocation2] sm:$0xff] %vm382, -inf
          %384 = vst.msk [vmem:[#allocation3] sm:$0xff] %vm382, 0.0
          %vm385 = vcmask 261120
          %386 = vst.msk [vmem:[#allocation4] sm:$0xff] %vm385, 0.0
          %v387 = vld [vmem:[%s367] sm:$0xff]
          %v388 = vmul.f32 %v387, 0.17677669
          %389 = vst.msk [vmem:[#allocation5] sm:$0xff] %vm385, %v388
        $region48: #{tpu_custom_call.1} parent=35 // pred_fallthru
          _
        %s390 = smul.u32 %s36, 8
        %v391 = vld [vmem:[#allocation5] sm:$0xff]
        %s392 = scalar_lea.vmem %s298, %s390 [#allocation7]
        %v393 = vld [vmem:[%s392] sm:$0xff]
        %s394 = scalar_lea.vmem %s307, %s390 [#allocation10]
        %v395 = vld [vmem:[%s394] sm:$0xff]
        %vm396 = vcmask 261120
        %v398 = vsel %vm396, %v391, 0
        %v401 = vsel %vm396, %v393, 0
        %403 = vmatprep.subr.mxu0 0.0
        %404 = vmatpush1.xpose.msra.mxu0 0.0
        %405 = vmatprep.subr.mxu0 0.0
        %406 = vmatpush1.xpose.msra.mxu0 0.0
        %407 = vmatprep.subr.mxu0 0.0
        %408 = vmatpush1.xpose.msra.mxu0 0.0
        %409 = vmatprep.subr.mxu0 0.0
        %410 = vmatpush1.xpose.msra.mxu0 0.0
        %411 = vmatprep.subr.mxu0 0.0
        %412 = vmatpush1.xpose.msra.mxu0 0.0
        %413 = vmatprep.subr.mxu0 0.0
        %414 = vmatpush1.xpose.msra.mxu0 0.0
        %415 = vmatprep.subr.mxu0 0.0
        %416 = vmatpush1.xpose.msra.mxu0 0.0
        %417 = vmatprep.subr.mxu0 0.0
        %418 = vmatpush1.xpose.msra.mxu0 0.0
        %419 = vmatprep.subr.mxu0 0.0
        %420 = vmatpush1.xpose.msra.mxu0 0.0
        %421 = vmatprep.subr.mxu0 0.0
        %422 = vmatpush1.xpose.msra.mxu0 0.0
        %423 = vmatprep.subr.mxu0 0.0
        %424 = vmatpush1.xpose.msra.mxu0 0.0
        %425 = vmatprep.subr.mxu0 0.0
        %426 = vmatpush1.xpose.msra.mxu0 0.0
        %427 = vmatprep.subr.mxu0 0.0
        %428 = vmatpush1.xpose.msra.mxu0 0.0
        %429 = vmatprep.subr.mxu0 0.0
        %430 = vmatpush1.xpose.msra.mxu0 0.0
        %431 = vmatprep.subr.mxu0 0.0
        %432 = vmatpush1.xpose.msra.mxu0 0.0
        %433 = vmatprep.subr.mxu0 0.0
        %434 = vmatpush1.xpose.msra.mxu0 %v401
        %435 = vmatprep.subr.mxu0 0.0
        %436 = vmatpush2.xpose.msra.mxu0 0.0
        %437 = vmatprep.subr.mxu0 0.0
        %438 = vmatpush2.xpose.msra.mxu0 0.0
        %439 = vmatprep.subr.mxu0 0.0
        %440 = vmatpush2.xpose.msra.mxu0 0.0
        %441 = vmatprep.subr.mxu0 0.0
        %442 = vmatpush2.xpose.msra.mxu0 0.0
        %443 = vmatprep.subr.mxu0 0.0
        %444 = vmatpush2.xpose.msra.mxu0 0.0
        %445 = vmatprep.subr.mxu0 0.0
        %446 = vmatpush2.xpose.msra.mxu0 0.0
        %447 = vmatprep.subr.mxu0 0.0
        %448 = vmatpush2.xpose.msra.mxu0 0.0
        %449 = vmatprep.subr.mxu0 0.0
        %450 = vmatpush2.xpose.msra.mxu0 0.0
        %451 = vmatprep.subr.mxu0 0.0
        %452 = vmatpush2.xpose.msra.mxu0 0.0
        %453 = vmatprep.subr.mxu0 0.0
        %454 = vmatpush2.xpose.msra.mxu0 0.0
        %455 = vmatprep.subr.mxu0 0.0
        %456 = vmatpush2.xpose.msra.mxu0 0.0
        %457 = vmatprep.subr.mxu0 0.0
        %458 = vmatpush2.xpose.msra.mxu0 0.0
        %459 = vmatprep.subr.mxu0 0.0
        %460 = vmatpush2.xpose.msra.mxu0 0.0
        %461 = vmatprep.subr.mxu0 0.0
        %462 = vmatpush2.xpose.msra.mxu0 0.0
        %463 = vmatprep.subr.mxu0 0.0
        %464 = vmatpush2.xpose.msra.mxu0 0.0
        %465 = vmatprep.subr.mxu0 0.0
        %466 = vmatpush2.xpose.msra.mxu0 0.0
        %467 = vmatprep.mubr.f32.mxu0 0.0
        %468 = vmatmul.mubr.f32.gmra.mxu0 %v398
        %v469 = vpop.f32.mrf.mxu0
        %v470 = vadd.f32 0.0, %v469
        %v471 = vpop.f32.mrf.mxu0
        %472 = vdwg.mxu0
        %v473 = vld [vmem:[%s377] sm:$0xff]
        %vm474 = vcmp.ne.s32.totalorder %v473, 0
        %v475 = vsel %vm474, -1e+09, %v470
        %v476 = vld [vmem:[#allocation2] sm:$0xff]
        %vm477 = vcmask 64512
        %v478 = vsel %vm477, %v475, -inf
        %479 = vmax.xlane.f32.xlu0 %v478
        %v480 = vpop.xlane.xlu0 %479
        %v481 = vmax.f32 %v476, %v480
        %v482 = vsub.f32 %v476, %v481
        %v483 = vmul.f32 %v482, 1.442695
        %v484 = vpow.pop %v483
        %486 = vset.pattern.permute.xlu0 0
        %487 = vperm.xlu0 %486, %v481
        %v488 = vpop.permute.xlu0 %487
        %v490 = vsub.f32 %v475, %v488
        %v491 = vmul.f32 %v490, 1.442695
        %v492 = vpow.pop %v491
        %v493 = vld [vmem:[#allocation3] sm:$0xff]
        %v494 = vmul.f32 %v484, %v493
        %v495 = vsel %vm477, %v492, 0.0
        %496 = vadd.xlane.f32.xlu0 %v495
        %v497 = vpop.xlane.xlu0 %496
        %v498 = vadd.f32 %v494, %v497
        %vm499 = vcmask 7168
        %500 = vst.msk [vmem:[#allocation3] sm:$0xff] %vm499, %v498
        %v501 = vld [vmem:[#allocation4] sm:$0xff]
        %503 = vset.pattern.permute.xlu0 0
        %504 = vperm.xlu0 %503, %v484
        %v505 = vpop.permute.xlu0 %504
        %v507 = vmul.f32 %v505, %v501
        %v509 = vsel %vm477, %v492, 0
        %511 = vmatprep.subr.mxu0 0.0
        %512 = vmatpush1.msra.mxu0 0.0
        %513 = vmatprep.subr.mxu0 0.0
        %514 = vmatpush1.msra.mxu0 0.0
        %515 = vmatprep.subr.mxu0 0.0
        %516 = vmatpush1.msra.mxu0 0.0
        %517 = vmatprep.subr.mxu0 0.0
        %518 = vmatpush1.msra.mxu0 0.0
        %519 = vmatprep.subr.mxu0 0.0
        %520 = vmatpush1.msra.mxu0 0.0
        %521 = vmatprep.subr.mxu0 0.0
        %522 = vmatpush1.msra.mxu0 0.0
        %523 = vmatprep.subr.mxu0 0.0
        %524 = vmatpush1.msra.mxu0 0.0
        %525 = vmatprep.subr.mxu0 0.0
        %526 = vmatpush1.msra.mxu0 0.0
        %527 = vmatprep.subr.mxu0 0.0
        %528 = vmatpush1.msra.mxu0 0.0
        %529 = vmatprep.subr.mxu0 0.0
        %530 = vmatpush1.msra.mxu0 0.0
        %531 = vmatprep.subr.mxu0 0.0
        %532 = vmatpush1.msra.mxu0 0.0
        %533 = vmatprep.subr.mxu0 0.0
        %534 = vmatpush1.msra.mxu0 0.0
        %535 = vmatprep.subr.mxu0 0.0
        %536 = vmatpush1.msra.mxu0 0.0
        %537 = vmatprep.subr.mxu0 0.0
        %538 = vmatpush1.msra.mxu0 0.0
        %539 = vmatprep.subr.mxu0 0.0
        %540 = vmatpush1.msra.mxu0 0.0
        %541 = vmatprep.subr.mxu0 0.0
        %542 = vmatpush1.msra.mxu0 %v395
        %543 = vmatprep.subr.mxu0 0.0
        %544 = vmatpush2.msra.mxu0 0.0
        %545 = vmatprep.subr.mxu0 0.0
        %546 = vmatpush2.msra.mxu0 0.0
        %547 = vmatprep.subr.mxu0 0.0
        %548 = vmatpush2.msra.mxu0 0.0
        %549 = vmatprep.subr.mxu0 0.0
        %550 = vmatpush2.msra.mxu0 0.0
        %551 = vmatprep.subr.mxu0 0.0
        %552 = vmatpush2.msra.mxu0 0.0
        %553 = vmatprep.subr.mxu0 0.0
        %554 = vmatpush2.msra.mxu0 0.0
        %555 = vmatprep.subr.mxu0 0.0
        %556 = vmatpush2.msra.mxu0 0.0
        %557 = vmatprep.subr.mxu0 0.0
        %558 = vmatpush2.msra.mxu0 0.0
        %559 = vmatprep.subr.mxu0 0.0
        %560 = vmatpush2.msra.mxu0 0.0
        %561 = vmatprep.subr.mxu0 0.0
        %562 = vmatpush2.msra.mxu0 0.0
        %563 = vmatprep.subr.mxu0 0.0
        %564 = vmatpush2.msra.mxu0 0.0
        %565 = vmatprep.subr.mxu0 0.0
        %566 = vmatpush2.msra.mxu0 0.0
        %567 = vmatprep.subr.mxu0 0.0
        %568 = vmatpush2.msra.mxu0 0.0
        %569 = vmatprep.subr.mxu0 0.0
        %570 = vmatpush2.msra.mxu0 0.0
        %571 = vmatprep.subr.mxu0 0.0
        %572 = vmatpush2.msra.mxu0 0.0
        %573 = vmatprep.subr.mxu0 0.0
        %574 = vmatpush2.msra.mxu0 0.0
        %575 = vmatprep.mubr.f32.mxu0 0.0
        %576 = vmatmul.mubr.f32.gmra.mxu0 %v509
        %v577 = vpop.f32.mrf.mxu0
        %v578 = vadd.f32 0.0, %v577
        %v579 = vpop.f32.mrf.mxu0
        %580 = vdwg.mxu0
        %v581 = vadd.f32 %v507, %v578
        %582 = vst.msk [vmem:[#allocation4] sm:$0xff] %vm396, %v581
        %583 = vst.msk [vmem:[#allocation2] sm:$0xff] %vm499, %v481
        %584 = vst.msk [vmem:[%s360] sm:$0xff] %vm477, %v492
        // Predicated region
        $region49: #{tpu_custom_call.1} parent=35 // pred_check
          %p585 = pneg %p378
        $region50: #{tpu_custom_call.1} parent=35 // pred_check_branch
          %587 = sbr.rel (%p585) target = $region52
        $region51: #{tpu_custom_call.1} parent=35 // pred_region
          %588 = vst.msk [vmem:[#allocation6] sm:$0xff] %vm499, %v481
          %v589 = vld [vmem:[#allocation3] sm:$0xff]
          %v590 = vrcp.pop %v589
          %v591 = vmul.f32 %v589, %v590
          %v592 = vsub.f32 2.0, %v591
          %v593 = vmul.f32 %v590, %v592
          %v594 = vld [vmem:[#allocation4] sm:$0xff]
          %596 = vset.pattern.permute.xlu0 0
          %597 = vperm.xlu0 %596, %v593
          %v598 = vpop.permute.xlu0 %597
          %v600 = vmul.f32 %v594, %v598
          %601 = vst.msk [vmem:[%s353] sm:$0xff] %vm396, %v600
          %v602 = vld [vmem:[#allocation2] sm:$0xff]
          %v603 = vld [vmem:[#allocation6] sm:$0xff]
          %v604 = vsub.f32 %v603, %v602
          %v605 = vmul.f32 %v604, 1.442695
          %v606 = vpow.pop %v605
          %v607 = vmul.f32 %v606, %v593
          %v608 = vld [vmem:[%s360] sm:$0xff]
          %610 = vset.pattern.permute.xlu0 0
          %611 = vperm.xlu0 %610, %v607
          %v612 = vpop.permute.xlu0 %611
          %v614 = vmul.f32 %v608, %v612
          %615 = vst.msk [vmem:[%s360] sm:$0xff] %vm477, %v614
        $region52: #{tpu_custom_call.1} parent=35 // pred_fallthru
          _
        %s616 = sand.u32 %s168, 1
        %s617 = scalar_lea.sflag [#allocation9], %s616
        %s618 = sand.u32 %s168, 1
        %s619 = smul.addr %s618, 8
        %s620 = scalar_lea.vmem [#allocation12], %s619
        %s621 = sand.u32 %s196, 1
        %s622 = scalar_lea.sflag [#allocation14], %s621
        %s623 = sand.u32 %s196, 1
        %s624 = smul.addr %s623, 8
        %s625 = scalar_lea.vmem [#allocation13], %s624
        // Predicated region
        $region53: #{tpu_custom_call.1} parent=35 // pred_check
          %p626 = pneg %p178
        $region54: #{tpu_custom_call.1} parent=35 // pred_check_branch
          %628 = sbr.rel (%p626) target = $region56
        $region55: #{tpu_custom_call.1} parent=35 // pred_region
          %s630 = ssub.s32 128, 128
          %631 = vsyncadd %s617, %s630
          %s632 = sadd.s32 %s35, %s34
          %s633 = smul.addr %s632, 128
          %s634 = scalar_lea.hbm %s4, %s633
          %s636 = sshll.u32 %s620, 4
          %s637 = int_to_ptr.vmem [resolvable:$true] %s636
          %639 = dma.vmem_to_hbm [thread:$0]  %s637, 128, %s634, %s617
        $region56: #{tpu_custom_call.1} parent=35 // pred_fallthru
          _
        // Predicated region
        $region57: #{tpu_custom_call.1} parent=35 // pred_check
          %p640 = pneg %p206
        $region58: #{tpu_custom_call.1} parent=35 // pred_check_branch
          %642 = sbr.rel (%p640) target = $region60
        $region59: #{tpu_custom_call.1} parent=35 // pred_region
          %s644 = ssub.s32 128, 128
          %645 = vsyncadd %s622, %s644
          %s646 = sadd.s32 %s35, %s34
          %s647 = smul.addr %s646, 128
          %s648 = scalar_lea.hbm %s5, %s647
          %s650 = sshll.u32 %s625, 4
          %s651 = int_to_ptr.vmem [resolvable:$true] %s650
          %653 = dma.vmem_to_hbm [thread:$0]  %s651, 128, %s648, %s622
        $region60: #{tpu_custom_call.1} parent=35 // pred_fallthru
          _
      $region36: #{tpu_custom_call.1} parent=5 // pred_fallthru
        _
      %p654 = scmp.le.s32.totalorder 2, %s24
      // Predicated region
      $region61: #{tpu_custom_call.1} parent=5 // pred_check
        %p655 = pneg %p654
      $region62: #{tpu_custom_call.1} parent=5 // pred_check_branch
        %657 = sbr.rel (%p655) target = $region64
      $region63: #{tpu_custom_call.1} parent=5 // pred_region
        %s658 = ssub.s32 %s24, 2
        // Predicated region
        $region65: #{tpu_custom_call.1} parent=63 // pred_check
          %p659 = pneg %p184
        $region66: #{tpu_custom_call.1} parent=63 // pred_check_branch
          %661 = sbr.rel (%p659) target = $region68
        $region67: #{tpu_custom_call.1} parent=63 // pred_region
          %s662 = sand.u32 %s169, 1
          %s663 = scalar_lea.sflag [#allocation9], %s662
          %s664 = sand.u32 %s169, 1
          %s665 = smul.addr %s664, 8
          %s666 = scalar_lea.vmem [#allocation12], %s665
          %667 = dma.done %s663, 128
        $region68: #{tpu_custom_call.1} parent=63 // pred_fallthru
          _
        // Predicated region
        $region69: #{tpu_custom_call.1} parent=63 // pred_check
          %p668 = pneg %p212
        $region70: #{tpu_custom_call.1} parent=63 // pred_check_branch
          %670 = sbr.rel (%p668) target = $region72
        $region71: #{tpu_custom_call.1} parent=63 // pred_region
          %s671 = sand.u32 %s197, 1
          %s672 = scalar_lea.sflag [#allocation14], %s671
          %s673 = sand.u32 %s197, 1
          %s674 = smul.addr %s673, 8
          %s675 = scalar_lea.vmem [#allocation13], %s674
          %676 = dma.done %s672, 128
        $region72: #{tpu_custom_call.1} parent=63 // pred_fallthru
          _
      $region64: #{tpu_custom_call.1} parent=5 // pred_fallthru
        _
    $region6: #{tpu_custom_call.1} parent=1 // loop_footer
      %s28 = sadd.s32 1, %s24
    $region7: #{tpu_custom_call.1} parent=1 // loop_footer_branch
      %23 = sbr.rel target = $region3
    $region8: #{tpu_custom_call.1} parent=1 // loop_exit
      _
    %677 = vsyncpa [#allocation8], 1
    %s678 = scalar_lea.sflag [#allocation8], 1
    %679 = vsyncpa %s678, 1
    %680 = vsyncpa [#allocation11], 1
    %s681 = scalar_lea.sflag [#allocation11], 1
    %682 = vsyncpa %s681, 1
    %683 = vsyncpa [#allocation9], 1
    %s684 = scalar_lea.sflag [#allocation9], 1
    %685 = vsyncpa %s684, 1
    %686 = vsyncpa [#allocation14], 1
    %s687 = scalar_lea.sflag [#allocation14], 1
    %688 = vsyncpa %s687, 1

</llo_original>
